<compile_context>
chip_gen: v6e
topology: v6e:2x2x1
jax: 0.10.0
libtpu: 0.0.40
codegen_flags: <defaults>
</compile_context>

<pallas_src>
from functools import partial

import jax
import jax.numpy as jnp
from jax.experimental import pallas as pl
from jax.experimental.pallas import tpu as pltpu


_SINGLE_BLOCK_MAX = 32768   # up to this many rows: one full-extent block, grid=()
_MAX_TILE = 32768           # per-block row budget when tiling is needed


def _round_up(n, m):
    return ((n + m - 1) // m) * m


def _qnet_kernel(x_ref, w1_ref, b1_ref, w2_ref, b2_ref, o_ref):
    # x_ref : (IN, TB)   feature-major batch tile (batch on the lane axis)
    # w1_ref: (H, IN)    b1_ref: (H, 1)
    # w2_ref: (OUT, H)   b2_ref: (OUT, 1)
    # o_ref : (OUT, TB)  lane-dense output tile
    x = x_ref[...]
    # Layer 1: MXU matmul (f32 accumulate) + VPU bias / ReLU.
    h = jnp.dot(w1_ref[...], x, preferred_element_type=jnp.float32) + b1_ref[...]
    h = jnp.maximum(h, 0.0)
    # Layer 2: MXU matmul + bias.  Hidden h never leaves VMEM.
    o = jnp.dot(w2_ref[...], h, preferred_element_type=jnp.float32) + b2_ref[...]
    o_ref[...] = o.astype(o_ref.dtype)


def pack_params(w1, b1, w2, b2):
    """One-time conversion from PyTorch layout to kernel layout.

    With the feature-major dataflow the weights need NO transpose at all:
    w1: (H, IN), w2: (OUT, H) are used as-is; biases become column vectors
    (H, 1) / (OUT, 1) so they broadcast over the batch (lane) axis.
    """
    return (w1.astype(jnp.float32),
            b1.reshape(-1, 1).astype(jnp.float32),
            w2.astype(jnp.float32),
            b2.reshape(-1, 1).astype(jnp.float32))


def _forward_fm_impl(x_fm, w1, b1, w2, b2, single_block_max, max_tile):
    """Feature-major forward: x_fm (IN, B) -> (OUT, B), f32."""
    IN, B = x_fm.shape
    H, IN2 = w1.shape
    OUT, H2 = w2.shape
    assert IN2 == IN and H2 == H
    assert b1.shape == (H, 1) and b2.shape == (OUT, 1)

    if B <= single_block_max:
        # One full-extent block per operand: grid=(), zero per-step overhead.
        # Optimal on single-TC chips (v5e/v6e); fine on v7x at these sizes.
        full = lambda shape: pl.BlockSpec(shape, lambda: (0,) * len(shape))
        return pl.pallas_call(
            _qnet_kernel,
            out_shape=jax.ShapeDtypeStruct((OUT, B), jnp.float32),
            grid=(),
            in_specs=[full((IN, B)), full((H, IN)), full((H, 1)),
                      full((OUT, H)), full((OUT, 1))],
            out_specs=full((OUT, B)),
        )(x_fm, w1, b1, w2, b2)

    # Large replay batch: as few, as large blocks as possible (>= 2 so v7x's
    # two TensorCores both get work under 'parallel'); weights are reused
    # every step (constant block index).  Ragged last block handled by Pallas
    # masked writeback -- no pad / slice glue.
    n_blocks = max(2, pl.cdiv(B, max_tile))
    tile = _round_up(pl.cdiv(B, n_blocks), 128)
    grid = (pl.cdiv(B, tile),)
    return pl.pallas_call(
        _qnet_kernel,
        out_shape=jax.ShapeDtypeStruct((OUT, B), jnp.float32),
        grid=grid,
        in_specs=[
            pl.BlockSpec((IN, tile), lambda i: (0, i)),
            pl.BlockSpec((H, IN), lambda i: (0, 0)),
            pl.BlockSpec((H, 1), lambda i: (0, 0)),
            pl.BlockSpec((OUT, H), lambda i: (0, 0)),
            pl.BlockSpec((OUT, 1), lambda i: (0, 0)),
        ],
        out_specs=pl.BlockSpec((OUT, tile), lambda i: (0, i)),
        compiler_params=pltpu.CompilerParams(
            dimension_semantics=("parallel",)),
    )(x_fm, w1, b1, w2, b2)


@partial(jax.jit, static_argnames=("single_block_max", "max_tile"))
def linear_qnet_forward_fm(x_fm, w1, b1, w2, b2, *,
                           single_block_max=_SINGLE_BLOCK_MAX,
                           max_tile=_MAX_TILE):
    """Preferred entry point: feature-major x_fm (IN, B) -> (OUT, B).

    Store the replay buffer feature-major and this path has zero layout glue.
    """
    return _forward_fm_impl(x_fm, w1, b1, w2, b2, single_block_max, max_tile)


@partial(jax.jit, static_argnames=("single_block_max", "max_tile"))
def linear_qnet_forward(x, w1, b1, w2, b2, *,
                        single_block_max=_SINGLE_BLOCK_MAX,
                        max_tile=_MAX_TILE):
    """PyTorch-layout convenience: x (B, IN) -> (B, OUT).

    The two transposes are cheap layout plumbing on (B, 11) / (3, B) arrays;
    use linear_qnet_forward_fm to avoid them entirely.
    """
    out_fm = _forward_fm_impl(x.T, w1, b1, w2, b2, single_block_max, max_tile)
    return out_fm.T


def init_params(key, input_size, hidden_size, output_size):
    """Deterministic PyTorch-style init: U(-1/sqrt(fan_in), 1/sqrt(fan_in))."""
    k1, k2, k3, k4 = jax.random.split(key, 4)
    bound1 = 1.0 / jnp.sqrt(jnp.float32(input_size))
    bound2 = 1.0 / jnp.sqrt(jnp.float32(hidden_size))
    w1 = jax.random.uniform(k1, (hidden_size, input_size), jnp.float32, -bound1, bound1)
    b1 = jax.random.uniform(k2, (hidden_size,), jnp.float32, -bound1, bound1)
    w2 = jax.random.uniform(k3, (output_size, hidden_size), jnp.float32, -bound2, bound2)
    b2 = jax.random.uniform(k4, (output_size,), jnp.float32, -bound2, bound2)
    return w1, b1, w2, b2


# TODO(synk): save()/load() (torch checkpoint I/O) is host-side file handling,
# not a kernel op; omitted here.

if __name__ == "__main__":
    # Snake-AI style sizes: 11 state features -> 32 hidden -> 3 actions.
    INPUT_SIZE, HIDDEN_SIZE, OUTPUT_SIZE = 11, 32, 3

    key = jax.random.PRNGKey(0)
    kx, kb, kp = jax.random.split(key, 3)

    w1, b1, w2, b2 = init_params(kp, INPUT_SIZE, HIDDEN_SIZE, OUTPUT_SIZE)
    params = pack_params(w1, b1, w2, b2)   # one-time, no transposes

    def torch_ref(xin):
        return jnp.maximum(xin @ w1.T + b1, 0.0) @ w2.T + b2

    # 1) Small 'act' batch, PyTorch (B, IN) layout -> single full-extent block.
    x = jax.random.normal(kx, (2, INPUT_SIZE), jnp.float32)
    out = jax.block_until_ready(linear_qnet_forward(x, *params))
    assert out.shape == (2, OUTPUT_SIZE)
    assert jnp.allclose(out, torch_ref(x), atol=1e-5, rtol=1e-5)

    # 2) Feature-major replay batch (zero layout glue), still a single block.
    xb = jax.random.normal(kb, (512, INPUT_SIZE), jnp.float32)
    out_fm = jax.block_until_ready(linear_qnet_forward_fm(xb.T, *params))
    assert out_fm.shape == (OUTPUT_SIZE, 512)
    assert jnp.allclose(out_fm.T, torch_ref(xb), atol=1e-5, rtol=1e-5)

    # 3) Exercise the tiled / ragged-last-block path at a small, fast scale
    #    (B=300, tile=128 -> grid=(3,), last block masked on writeback).
    x3 = xb[:300]
    out_t = jax.block_until_ready(
        linear_qnet_forward_fm(x3.T, *params, single_block_max=128, max_tile=128))
    assert out_t.shape == (OUTPUT_SIZE, 300)
    assert jnp.allclose(out_t.T, torch_ref(x3), atol=1e-5, rtol=1e-5)

    print("KERNEL_OK")
</pallas_src>

<mosaic_0001>
module attributes {stable_mosaic.version = 11 : i64} {
  func.func @_qnet_kernel(%arg0: memref<11x2xf32, #tpu.memory_space<vmem>>, %arg1: memref<32x11xf32, #tpu.memory_space<vmem>>, %arg2: memref<32x1xf32, #tpu.memory_space<vmem>>, %arg3: memref<3x32xf32, #tpu.memory_space<vmem>>, %arg4: memref<3x1xf32, #tpu.memory_space<vmem>>, %arg5: memref<3x2xf32, #tpu.memory_space<vmem>>) attributes {dimension_semantics = [], scalar_prefetch = 0 : i64, scratch_operands = 0 : i64, tpu.core_type = #tpu.core_type<tc>} {
    %c0 = arith.constant 0 : index
    %c0_0 = arith.constant 0 : index
    %0 = vector.load %arg0[%c0, %c0_0] : memref<11x2xf32, #tpu.memory_space<vmem>>, vector<11x2xf32>
    %c0_1 = arith.constant 0 : index
    %c0_2 = arith.constant 0 : index
    %1 = vector.load %arg1[%c0_1, %c0_2] : memref<32x11xf32, #tpu.memory_space<vmem>>, vector<32x11xf32>
    %cst = arith.constant dense<0.000000e+00> : vector<32x2xf32>
    %2 = tpu.matmul %1, %0, %cst {dimension_numbers = #tpu.dot_dimension_numbers<[1], [0], [0], [1], [0, 0, 1, 1], [], []>} : vector<32x11xf32>, vector<11x2xf32>, vector<32x2xf32> -> vector<32x2xf32>
    %c0_3 = arith.constant 0 : index
    %c0_4 = arith.constant 0 : index
    %3 = vector.load %arg2[%c0_3, %c0_4] : memref<32x1xf32, #tpu.memory_space<vmem>>, vector<32x1xf32>
    %4 = vector.broadcast %3 : vector<32x1xf32> to vector<32x2xf32>
    %5 = arith.addf %2, %4 : vector<32x2xf32>
    %cst_5 = arith.constant 0.000000e+00 : f32
    %6 = vector.broadcast %cst_5 : f32 to vector<32x2xf32>
    %7 = arith.maximumf %5, %6 : vector<32x2xf32>
    %c0_6 = arith.constant 0 : index
    %c0_7 = arith.constant 0 : index
    %8 = vector.load %arg3[%c0_6, %c0_7] : memref<3x32xf32, #tpu.memory_space<vmem>>, vector<3x32xf32>
    %cst_8 = arith.constant dense<0.000000e+00> : vector<3x2xf32>
    %9 = tpu.matmul %8, %7, %cst_8 {dimension_numbers = #tpu.dot_dimension_numbers<[1], [0], [0], [1], [0, 0, 1, 1], [], []>} : vector<3x32xf32>, vector<32x2xf32>, vector<3x2xf32> -> vector<3x2xf32>
    %c0_9 = arith.constant 0 : index
    %c0_10 = arith.constant 0 : index
    %10 = vector.load %arg4[%c0_9, %c0_10] : memref<3x1xf32, #tpu.memory_space<vmem>>, vector<3x1xf32>
    %11 = vector.broadcast %10 : vector<3x1xf32> to vector<3x2xf32>
    %12 = arith.addf %9, %11 : vector<3x2xf32>
    %c0_11 = arith.constant 0 : index
    %c0_12 = arith.constant 0 : index
    %13 = vector.load %arg5[%c0_11, %c0_12] : memref<3x2xf32, #tpu.memory_space<vmem>>, vector<3x2xf32>
    tpu.vector_store %arg5[%c0_11, %c0_12], %12 {strides = array<i32>} : memref<3x2xf32, #tpu.memory_space<vmem>>, vector<3x2xf32>,
    return
  }
}

</mosaic_0001>

<llo_original>
// kernel: linear_qnet_forward.1
$region0: #{linear_qnet_forward.1}
  #allocation0 [shape = 'u32[]', space=smem, size = 0x4, offset = 0x4, fixed_abs, tag = 'smem constant byte address 0x4 - core index']
  #allocation1 [shape = 'u32[144,128]{1,0:T(1,128)}', space=vmem, size = 0x12000, scoped, tag = 'internal scratch']
  %s0 = inlined_call_operand.vmem [shape: f32[11,2], index: 0, kind: input, shape index: {}]
  %s1 = inlined_call_operand.vmem [shape: f32[32,11], index: 1, kind: input, shape index: {}]
  %s2 = inlined_call_operand.vmem [shape: f32[32,1], index: 2, kind: input, shape index: {}]
  %s3 = inlined_call_operand.vmem [shape: f32[3,32], index: 3, kind: input, shape index: {}]
  %s4 = inlined_call_operand.vmem [shape: f32[3,1], index: 4, kind: input, shape index: {}]
  %s5 = inlined_call_operand.vmem [shape: f32[3,2], index: 5, kind: output, shape index: {}]
  %s6 = sld [smem:[#allocation0]]
  $region30: #{linear_qnet_forward.1} parent=0
    _
  %s8 = ssub.s32 1, %s6
  %s9 = scalar_select 0, %s8, %s6
  // Predicated region
  $region2: #{linear_qnet_forward.1} parent=0 // pred_check
    _
  $region3: #{linear_qnet_forward.1} parent=0 // pred_check_branch
    %11 = sbr.rel (0) target = $region5
  $region4: #{linear_qnet_forward.1} parent=0 // pred_region
    _
  $region5: #{linear_qnet_forward.1} parent=0 // pred_fallthru
    _
  // Predicated region
  $region6: #{linear_qnet_forward.1} parent=0 // pred_check
    _
  $region7: #{linear_qnet_forward.1} parent=0 // pred_check_branch
    %13 = sbr.rel (0) target = $region9
  $region8: #{linear_qnet_forward.1} parent=0 // pred_region
    _
  $region9: #{linear_qnet_forward.1} parent=0 // pred_fallthru
    _
  // Predicated region
  $region10: #{linear_qnet_forward.1} parent=0 // pred_check
    _
  $region11: #{linear_qnet_forward.1} parent=0 // pred_check_branch
    %15 = sbr.rel (0) target = $region13
  $region12: #{linear_qnet_forward.1} parent=0 // pred_region
    _
  $region13: #{linear_qnet_forward.1} parent=0 // pred_fallthru
    _
  // Predicated region
  $region14: #{linear_qnet_forward.1} parent=0 // pred_check
    _
  $region15: #{linear_qnet_forward.1} parent=0 // pred_check_branch
    %17 = sbr.rel (0) target = $region17
  $region16: #{linear_qnet_forward.1} parent=0 // pred_region
    _
  $region17: #{linear_qnet_forward.1} parent=0 // pred_fallthru
    _
  // Predicated region
  $region18: #{linear_qnet_forward.1} parent=0 // pred_check
    _
  $region19: #{linear_qnet_forward.1} parent=0 // pred_check_branch
    %19 = sbr.rel (0) target = $region21
  $region20: #{linear_qnet_forward.1} parent=0 // pred_region
    _
  $region21: #{linear_qnet_forward.1} parent=0 // pred_fallthru
    _
  %v20 = vld [vmem:[%s0] sm:$0xff]
  %v21 = vld [vmem:[%s0 + $0x8] sm:$0x7]
  %v22 = vld [vmem:[%s1] sm:$0xff]
  %v23 = vld [vmem:[%s1 + $0x8] sm:$0xff]
  %v24 = vld [vmem:[%s1 + $0x10] sm:$0xff]
  %v25 = vld [vmem:[%s1 + $0x18] sm:$0xff]
  %v26 = vld [vmem:[%s2] sm:$0xff]
  %v27 = vld [vmem:[%s2 + $0x8] sm:$0xff]
  %v28 = vld [vmem:[%s2 + $0x10] sm:$0xff]
  %v29 = vld [vmem:[%s2 + $0x18] sm:$0xff]
  %31 = vset.pattern.permute.xlu0 0
  %32 = vperm.xlu0 %31, %v26
  %v33 = vpop.permute.xlu0 %32
  %36 = vset.pattern.permute.xlu0 0
  %37 = vperm.xlu0 %36, %v27
  %v38 = vpop.permute.xlu0 %37
  %41 = vset.pattern.permute.xlu0 0
  %42 = vperm.xlu0 %41, %v28
  %v43 = vpop.permute.xlu0 %42
  %46 = vset.pattern.permute.xlu0 0
  %47 = vperm.xlu0 %46, %v29
  %v48 = vpop.permute.xlu0 %47
  %vm50 = vcmask 89088
  %v52 = vsel %vm50, %v22, 0
  %v55 = vsel %vm50, %v23, 0
  %v58 = vsel %vm50, %v24, 0
  %v61 = vsel %vm50, %v25, 0
  %vm63 = vcmask 1042432
  %v65 = vsel %vm63, %v21, 0
  %67 = vmatprep.subr.mxu0 0.0
  %68 = vmatpush1.msra.mxu0 0.0
  %69 = vmatprep.subr.mxu0 0.0
  %70 = vmatpush1.msra.mxu0 0.0
  %71 = vmatprep.subr.mxu0 0.0
  %72 = vmatpush1.msra.mxu0 0.0
  %73 = vmatprep.subr.mxu0 0.0
  %74 = vmatpush1.msra.mxu0 0.0
  %75 = vmatprep.subr.mxu0 0.0
  %76 = vmatpush1.msra.mxu0 0.0
  %77 = vmatprep.subr.mxu0 0.0
  %78 = vmatpush1.msra.mxu0 0.0
  %79 = vmatprep.subr.mxu0 0.0
  %80 = vmatpush1.msra.mxu0 0.0
  %81 = vmatprep.subr.mxu0 0.0
  %82 = vmatpush1.msra.mxu0 0.0
  %83 = vmatprep.subr.mxu0 0.0
  %84 = vmatpush1.msra.mxu0 0.0
  %85 = vmatprep.subr.mxu0 0.0
  %86 = vmatpush1.msra.mxu0 0.0
  %87 = vmatprep.subr.mxu0 0.0
  %88 = vmatpush1.msra.mxu0 0.0
  %89 = vmatprep.subr.mxu0 0.0
  %90 = vmatpush1.msra.mxu0 0.0
  %91 = vmatprep.subr.mxu0 0.0
  %92 = vmatpush1.msra.mxu0 0.0
  %93 = vmatprep.subr.mxu0 0.0
  %94 = vmatpush1.msra.mxu0 0.0
  %95 = vmatprep.subr.mxu0 0.0
  %96 = vmatpush1.msra.mxu0 %v65
  %97 = vmatprep.subr.mxu0 0.0
  %98 = vmatpush1.msra.mxu0 %v20
  %99 = vmatprep.subr.mxu0 0.0
  %100 = vmatpush2.msra.mxu0 0.0
  %101 = vmatprep.subr.mxu0 0.0
  %102 = vmatpush2.msra.mxu0 0.0
  %103 = vmatprep.subr.mxu0 0.0
  %104 = vmatpush2.msra.mxu0 0.0
  %105 = vmatprep.subr.mxu0 0.0
  %106 = vmatpush2.msra.mxu0 0.0
  %107 = vmatprep.subr.mxu0 0.0
  %108 = vmatpush2.msra.mxu0 0.0
  %109 = vmatprep.subr.mxu0 0.0
  %110 = vmatpush2.msra.mxu0 0.0
  %111 = vmatprep.subr.mxu0 0.0
  %112 = vmatpush2.msra.mxu0 0.0
  %113 = vmatprep.subr.mxu0 0.0
  %114 = vmatpush2.msra.mxu0 0.0
  %115 = vmatprep.subr.mxu0 0.0
  %116 = vmatpush2.msra.mxu0 0.0
  %117 = vmatprep.subr.mxu0 0.0
  %118 = vmatpush2.msra.mxu0 0.0
  %119 = vmatprep.subr.mxu0 0.0
  %120 = vmatpush2.msra.mxu0 0.0
  %121 = vmatprep.subr.mxu0 0.0
  %122 = vmatpush2.msra.mxu0 0.0
  %123 = vmatprep.subr.mxu0 0.0
  %124 = vmatpush2.msra.mxu0 0.0
  %125 = vmatprep.subr.mxu0 0.0
  %126 = vmatpush2.msra.mxu0 0.0
  %127 = vmatprep.subr.mxu0 0.0
  %128 = vmatpush2.msra.mxu0 0.0
  %129 = vmatprep.subr.mxu0 0.0
  %130 = vmatpush2.msra.mxu0 0.0
  %131 = vmatprep.mubr.f32.mxu0 0.0
  %132 = vmatmul.mubr.f32.gmra.mxu0 %v52
  %v133 = vpop.f32.mrf.mxu0
  %v134 = vadd.f32 %v33, %v133
  %v135 = vpop.f32.mrf.mxu0
  %136 = vmatprep.mubr.f32.mxu0 0.0
  %137 = vmatmul.mubr.f32.gmra.mxu0 %v55
  %v138 = vpop.f32.mrf.mxu0
  %v139 = vadd.f32 %v38, %v138
  %v140 = vpop.f32.mrf.mxu0
  %141 = vmatprep.mubr.f32.mxu0 0.0
  %142 = vmatmul.mubr.f32.gmra.mxu0 %v58
  %v143 = vpop.f32.mrf.mxu0
  %v144 = vadd.f32 %v43, %v143
  %v145 = vpop.f32.mrf.mxu0
  %146 = vmatprep.mubr.f32.mxu0 0.0
  %147 = vmatmul.mubr.f32.gmra.mxu0 %v61
  %v148 = vpop.f32.mrf.mxu0
  %v149 = vadd.f32 %v48, %v148
  %v150 = vpop.f32.mrf.mxu0
  %151 = vdwg.mxu0
  %v152 = vmax.f32 %v134, 0.0
  %v153 = vmax.f32 %v139, 0.0
  %v154 = vmax.f32 %v144, 0.0
  %v155 = vmax.f32 %v149, 0.0
  %v156 = vld [vmem:[%s3] sm:$0x7]
  %v157 = vld [vmem:[%s4] sm:$0x7]
  %159 = vset.pattern.permute.xlu0 0
  %160 = vperm.xlu0 %159, %v157
  %v161 = vpop.permute.xlu0 %160
  %vm163 = vcmask 261120
  %v165 = vsel %vm163, %v156, 0
  %167 = vmatprep.subr.mxu0 0.0
  %168 = vmatpush1.msra.mxu0 0.0
  %169 = vmatprep.subr.mxu0 0.0
  %170 = vmatpush1.msra.mxu0 0.0
  %171 = vmatprep.subr.mxu0 0.0
  %172 = vmatpush1.msra.mxu0 0.0
  %173 = vmatprep.subr.mxu0 0.0
  %174 = vmatpush1.msra.mxu0 0.0
  %175 = vmatprep.subr.mxu0 0.0
  %176 = vmatpush1.msra.mxu0 0.0
  %177 = vmatprep.subr.mxu0 0.0
  %178 = vmatpush1.msra.mxu0 0.0
  %179 = vmatprep.subr.mxu0 0.0
  %180 = vmatpush1.msra.mxu0 0.0
  %181 = vmatprep.subr.mxu0 0.0
  %182 = vmatpush1.msra.mxu0 0.0
  %183 = vmatprep.subr.mxu0 0.0
  %184 = vmatpush1.msra.mxu0 0.0
  %185 = vmatprep.subr.mxu0 0.0
  %186 = vmatpush1.msra.mxu0 0.0
  %187 = vmatprep.subr.mxu0 0.0
  %188 = vmatpush1.msra.mxu0 0.0
  %189 = vmatprep.subr.mxu0 0.0
  %190 = vmatpush1.msra.mxu0 0.0
  %191 = vmatprep.subr.mxu0 0.0
  %192 = vmatpush1.msra.mxu0 %v155
  %193 = vmatprep.subr.mxu0 0.0
  %194 = vmatpush1.msra.mxu0 %v154
  %195 = vmatprep.subr.mxu0 0.0
  %196 = vmatpush1.msra.mxu0 %v153
  %197 = vmatprep.subr.mxu0 0.0
  %198 = vmatpush1.msra.mxu0 %v152
  %199 = vmatprep.subr.mxu0 0.0
  %200 = vmatpush2.msra.mxu0 0.0
  %201 = vmatprep.subr.mxu0 0.0
  %202 = vmatpush2.msra.mxu0 0.0
  %203 = vmatprep.subr.mxu0 0.0
  %204 = vmatpush2.msra.mxu0 0.0
  %205 = vmatprep.subr.mxu0 0.0
  %206 = vmatpush2.msra.mxu0 0.0
  %207 = vmatprep.subr.mxu0 0.0
  %208 = vmatpush2.msra.mxu0 0.0
  %209 = vmatprep.subr.mxu0 0.0
  %210 = vmatpush2.msra.mxu0 0.0
  %211 = vmatprep.subr.mxu0 0.0
  %212 = vmatpush2.msra.mxu0 0.0
  %213 = vmatprep.subr.mxu0 0.0
  %214 = vmatpush2.msra.mxu0 0.0
  %215 = vmatprep.subr.mxu0 0.0
  %216 = vmatpush2.msra.mxu0 0.0
  %217 = vmatprep.subr.mxu0 0.0
  %218 = vmatpush2.msra.mxu0 0.0
  %219 = vmatprep.subr.mxu0 0.0
  %220 = vmatpush2.msra.mxu0 0.0
  %221 = vmatprep.subr.mxu0 0.0
  %222 = vmatpush2.msra.mxu0 0.0
  %223 = vmatprep.subr.mxu0 0.0
  %224 = vmatpush2.msra.mxu0 0.0
  %225 = vmatprep.subr.mxu0 0.0
  %226 = vmatpush2.msra.mxu0 0.0
  %227 = vmatprep.subr.mxu0 0.0
  %228 = vmatpush2.msra.mxu0 0.0
  %229 = vmatprep.subr.mxu0 0.0
  %230 = vmatpush2.msra.mxu0 0.0
  %231 = vmatprep.mubr.f32.mxu0 0.0
  %232 = vmatmul.mubr.f32.gmra.mxu0 %v165
  %v233 = vpop.f32.mrf.mxu0
  %v234 = vadd.f32 %v161, %v233
  %v235 = vpop.f32.mrf.mxu0
  %236 = vdwg.mxu0
  %vm237 = vcmask 10240
  %238 = vst.msk [vmem:[%s5] sm:$0x7] %vm237, %v234
  // Predicated region
  $region22: #{linear_qnet_forward.1} parent=0 // pred_check
    _
  $region23: #{linear_qnet_forward.1} parent=0 // pred_check_branch
    %240 = sbr.rel (0) target = $region25
  $region24: #{linear_qnet_forward.1} parent=0 // pred_region
    _
  $region25: #{linear_qnet_forward.1} parent=0 // pred_fallthru
    _
  // Predicated region
  $region26: #{linear_qnet_forward.1} parent=0 // pred_check
    _
  $region27: #{linear_qnet_forward.1} parent=0 // pred_check_branch
    %242 = sbr.rel (0) target = $region29
  $region28: #{linear_qnet_forward.1} parent=0 // pred_region
    _
  $region29: #{linear_qnet_forward.1} parent=0 // pred_fallthru
    _

</llo_original>
